<compile_context>
chip_gen: v6e
topology: v6e:2x2x1
jax: 0.10.0
libtpu: 0.0.40
codegen_flags: <defaults>
</compile_context>

<pallas_src>
import math

import jax
import jax.numpy as jnp
from jax.experimental import pallas as pl
from jax.experimental.pallas import tpu as pltpu


# -----------------------------------------------------------------------------
# Fused kernel: x -> Linear -> LeakyReLU -> Linear -> LeakyReLU -> [mu | sigma]
# Three MXU dots (bf16 operands, f32 accumulation), VPU selects for LeakyReLU.
# Entire working set is VMEM-resident; no grid / pipelining.
# -----------------------------------------------------------------------------
def _mlp_kernel(x_ref, w1_ref, w2_ref, wh_ref, b12_ref, bh_ref, out_ref):
    x = x_ref[...]                                            # (B, F) bf16

    # Layer 1: (B, F) @ (F, C) + b1, LeakyReLU(0.01) in f32.
    h = jnp.dot(x, w1_ref[...], preferred_element_type=jnp.float32)
    h = h + b12_ref[0:1, :]
    h = jnp.where(h >= 0.0, h, 0.01 * h)

    # Layer 2: (B, C) @ (C, C) + b2, LeakyReLU(0.01) in f32.
    h = jnp.dot(h.astype(jnp.bfloat16), w2_ref[...],
                preferred_element_type=jnp.float32)
    h = h + b12_ref[1:2, :]
    h = jnp.where(h >= 0.0, h, 0.01 * h)

    # Fused mu/sigma head: (B, C) @ (C, 2C) + [bmu | bsig] -> (B, 2C).
    out = jnp.dot(h.astype(jnp.bfloat16), wh_ref[...],
                  preferred_element_type=jnp.float32)
    out = out + bh_ref[...]

    out_ref[...] = out.astype(out_ref.dtype)


def mlp_forward(style, params):
    """style: any shape with leading batch dim. Returns (mu, sigma), each (B, C, 1, 1, 1)."""
    w1, b1, w2, b2, wmu, bmu, wsig, bsig = params
    B = style.shape[0]
    F = w1.shape[0]
    C = w1.shape[1]

    # nn.Flatten(): row-major flatten of all trailing dims (matches torch
    # contiguous layout for these inputs).
    x = style.reshape(B, F).astype(jnp.bfloat16)

    # Fuse / pack parameters (one-time cost; done by XLA outside the kernel).
    w1_b = w1.astype(jnp.bfloat16)                                   # (F, C)
    w2_b = w2.astype(jnp.bfloat16)                                   # (C, C)
    wh_b = jnp.concatenate([wmu, wsig], axis=1).astype(jnp.bfloat16)  # (C, 2C)
    b12 = jnp.stack([b1, b2], axis=0).astype(jnp.float32)            # (2, C)
    bh = jnp.concatenate([bmu, bsig]).reshape(1, 2 * C).astype(jnp.float32)

    vmem = pl.BlockSpec(memory_space=pltpu.MemorySpace.VMEM)

    out = pl.pallas_call(
        _mlp_kernel,
        out_shape=jax.ShapeDtypeStruct((B, 2 * C), jnp.float32),
        in_specs=[vmem] * 6,
        out_specs=vmem,
    )(x, w1_b, w2_b, wh_b, b12, bh)

    mu = out[:, :C]
    sigma = out[:, C:]
    # .view(-1, channel, 1, 1, 1) from the reference forward.
    return mu.reshape(B, C, 1, 1, 1), sigma.reshape(B, C, 1, 1, 1)


# -----------------------------------------------------------------------------
# Deterministic synthetic parameters (emulating LazyLinear's fan-in uniform init)
# and a pure-JAX reference for a numerical sanity check.
# -----------------------------------------------------------------------------
def init_params(key, in_features, channel):
    ks = jax.random.split(key, 8)

    def lin(kw, kb, fin, fout):
        bound = 1.0 / math.sqrt(fin)
        w = jax.random.uniform(kw, (fin, fout), jnp.float32, -bound, bound)
        b = jax.random.uniform(kb, (fout,), jnp.float32, -bound, bound)
        return w, b

    w1, b1 = lin(ks[0], ks[1], in_features, channel)
    w2, b2 = lin(ks[2], ks[3], channel, channel)
    wmu, bmu = lin(ks[4], ks[5], channel, channel)
    wsig, bsig = lin(ks[6], ks[7], channel, channel)
    return (w1, b1, w2, b2, wmu, bmu, wsig, bsig)


def mlp_reference(style, params):
    w1, b1, w2, b2, wmu, bmu, wsig, bsig = params
    B = style.shape[0]
    C = w1.shape[1]
    x = style.reshape(B, -1).astype(jnp.float32)
    h = x @ w1 + b1
    h = jnp.where(h >= 0.0, h, 0.01 * h)
    h = h @ w2 + b2
    h = jnp.where(h >= 0.0, h, 0.01 * h)
    mu = h @ wmu + bmu
    sg = h @ wsig + bsig
    return mu.reshape(B, C, 1, 1, 1), sg.reshape(B, C, 1, 1, 1)


if __name__ == "__main__":
    key = jax.random.PRNGKey(0)
    kx, kp = jax.random.split(key)

    # Small shapes consistent with the module: batch=2, channel=32,
    # style tensor (2, 4, 4, 4, 4) -> 256 flattened input features.
    B, channel = 2, 32
    style = jax.random.normal(kx, (B, 4, 4, 4, 4), jnp.float32)
    in_features = 4 * 4 * 4 * 4

    params = init_params(kp, in_features, channel)

    mu, sigma = mlp_forward(style, params)
    jax.block_until_ready(mu)
    jax.block_until_ready(sigma)

    # Shape sanity (mirrors the torch module's .view(-1, C, 1, 1, 1)).
    assert mu.shape == (B, channel, 1, 1, 1)
    assert sigma.shape == (B, channel, 1, 1, 1)

    # Numerical sanity vs. pure-JAX f32 reference (tolerance loosened for
    # the bf16 matmul operands; accumulation stays in f32).
    mu_ref, sg_ref = mlp_reference(style, params)
    assert float(jnp.max(jnp.abs(mu - mu_ref))) < 5e-2
    assert float(jnp.max(jnp.abs(sigma - sg_ref))) < 5e-2

    print("KERNEL_OK")
</pallas_src>

<mosaic_0001>
module attributes {stable_mosaic.version = 11 : i64} {
  func.func @_mlp_kernel(%arg0: memref<2x256xbf16, #tpu.memory_space<vmem>>, %arg1: memref<256x32xbf16, #tpu.memory_space<vmem>>, %arg2: memref<32x32xbf16, #tpu.memory_space<vmem>>, %arg3: memref<32x64xbf16, #tpu.memory_space<vmem>>, %arg4: memref<2x32xf32, #tpu.memory_space<vmem>>, %arg5: memref<1x64xf32, #tpu.memory_space<vmem>>, %arg6: memref<2x64xf32, #tpu.memory_space<vmem>>) attributes {dimension_semantics = [], scalar_prefetch = 0 : i64, scratch_operands = 0 : i64, tpu.core_type = #tpu.core_type<tc>} {
    %c0 = arith.constant 0 : index
    %c0_0 = arith.constant 0 : index
    %0 = vector.load %arg0[%c0, %c0_0] : memref<2x256xbf16, #tpu.memory_space<vmem>>, vector<2x256xbf16>
    %c0_1 = arith.constant 0 : index
    %c0_2 = arith.constant 0 : index
    %1 = vector.load %arg1[%c0_1, %c0_2] : memref<256x32xbf16, #tpu.memory_space<vmem>>, vector<256x32xbf16>
    %cst = arith.constant dense<0.000000e+00> : vector<2x32xf32>
    %2 = tpu.matmul %0, %1, %cst {dimension_numbers = #tpu.dot_dimension_numbers<[1], [0], [0], [1], [0, 0, 1, 1], [], []>} : vector<2x256xbf16>, vector<256x32xbf16>, vector<2x32xf32> -> vector<2x32xf32>
    %c0_3 = arith.constant 0 : index
    %c0_4 = arith.constant 0 : index
    %3 = vector.load %arg4[%c0_3, %c0_4] : memref<2x32xf32, #tpu.memory_space<vmem>>, vector<1x32xf32>
    %4 = vector.broadcast %3 : vector<1x32xf32> to vector<2x32xf32>
    %5 = arith.addf %2, %4 : vector<2x32xf32>
    %cst_5 = arith.constant 0.000000e+00 : f32
    %6 = vector.broadcast %cst_5 : f32 to vector<2x32xf32>
    %7 = arith.cmpf oge, %5, %6 : vector<2x32xf32>
    %cst_6 = arith.constant 0.00999999977 : f32
    %8 = vector.broadcast %cst_6 : f32 to vector<2x32xf32>
    %9 = arith.mulf %8, %5 : vector<2x32xf32>
    %10 = arith.select %7, %5, %9 : vector<2x32xi1>, vector<2x32xf32>
    %11 = arith.truncf %10 : vector<2x32xf32> to vector<2x32xbf16>
    %c0_7 = arith.constant 0 : index
    %c0_8 = arith.constant 0 : index
    %12 = vector.load %arg2[%c0_7, %c0_8] : memref<32x32xbf16, #tpu.memory_space<vmem>>, vector<32x32xbf16>
    %cst_9 = arith.constant dense<0.000000e+00> : vector<2x32xf32>
    %13 = tpu.matmul %11, %12, %cst_9 {dimension_numbers = #tpu.dot_dimension_numbers<[1], [0], [0], [1], [0, 0, 1, 1], [], []>} : vector<2x32xbf16>, vector<32x32xbf16>, vector<2x32xf32> -> vector<2x32xf32>
    %c1 = arith.constant 1 : index
    %c0_10 = arith.constant 0 : index
    %14 = vector.load %arg4[%c1, %c0_10] : memref<2x32xf32, #tpu.memory_space<vmem>>, vector<1x32xf32>
    %15 = vector.broadcast %14 : vector<1x32xf32> to vector<2x32xf32>
    %16 = arith.addf %13, %15 : vector<2x32xf32>
    %cst_11 = arith.constant 0.000000e+00 : f32
    %17 = vector.broadcast %cst_11 : f32 to vector<2x32xf32>
    %18 = arith.cmpf oge, %16, %17 : vector<2x32xf32>
    %cst_12 = arith.constant 0.00999999977 : f32
    %19 = vector.broadcast %cst_12 : f32 to vector<2x32xf32>
    %20 = arith.mulf %19, %16 : vector<2x32xf32>
    %21 = arith.select %18, %16, %20 : vector<2x32xi1>, vector<2x32xf32>
    %22 = arith.truncf %21 : vector<2x32xf32> to vector<2x32xbf16>
    %c0_13 = arith.constant 0 : index
    %c0_14 = arith.constant 0 : index
    %23 = vector.load %arg3[%c0_13, %c0_14] : memref<32x64xbf16, #tpu.memory_space<vmem>>, vector<32x64xbf16>
    %cst_15 = arith.constant dense<0.000000e+00> : vector<2x64xf32>
    %24 = tpu.matmul %22, %23, %cst_15 {dimension_numbers = #tpu.dot_dimension_numbers<[1], [0], [0], [1], [0, 0, 1, 1], [], []>} : vector<2x32xbf16>, vector<32x64xbf16>, vector<2x64xf32> -> vector<2x64xf32>
    %c0_16 = arith.constant 0 : index
    %c0_17 = arith.constant 0 : index
    %25 = vector.load %arg5[%c0_16, %c0_17] : memref<1x64xf32, #tpu.memory_space<vmem>>, vector<1x64xf32>
    %26 = vector.broadcast %25 : vector<1x64xf32> to vector<2x64xf32>
    %27 = arith.addf %24, %26 : vector<2x64xf32>
    %c0_18 = arith.constant 0 : index
    %c0_19 = arith.constant 0 : index
    %28 = vector.load %arg6[%c0_18, %c0_19] : memref<2x64xf32, #tpu.memory_space<vmem>>, vector<2x64xf32>
    tpu.vector_store %arg6[%c0_18, %c0_19], %27 {strides = array<i32>} : memref<2x64xf32, #tpu.memory_space<vmem>>, vector<2x64xf32>,
    return
  }
}

</mosaic_0001>

<llo_original>
// kernel: tpu_custom_call.1
$region0: #{tpu_custom_call.1}
  #allocation0 [shape = 'u32[]', space=smem, size = 0x4, offset = 0x4, fixed_abs, tag = 'smem constant byte address 0x4 - core index']
  #allocation1 [shape = 'u32[144,128]{1,0:T(1,128)}', space=vmem, size = 0x12000, scoped, tag = 'internal scratch']
  %s0 = inlined_call_operand.vmem [shape: bf16[2,256], index: 0, kind: input, shape index: {}]
  %s1 = inlined_call_operand.vmem [shape: bf16[256,32], index: 1, kind: input, shape index: {}]
  %s2 = inlined_call_operand.vmem [shape: bf16[32,32], index: 2, kind: input, shape index: {}]
  %s3 = inlined_call_operand.vmem [shape: bf16[32,64], index: 3, kind: input, shape index: {}]
  %s4 = inlined_call_operand.vmem [shape: f32[2,32], index: 4, kind: input, shape index: {}]
  %s5 = inlined_call_operand.vmem [shape: f32[1,64], index: 5, kind: input, shape index: {}]
  %s6 = inlined_call_operand.hbm [shape: f32[2,64], index: 6, kind: output, shape index: {}]
  %s7 = sld [smem:[#allocation0]]
  $region34: #{tpu_custom_call.1} parent=0
    _
  %s9 = ssub.s32 1, %s7
  %s10 = scalar_select 0, %s9, %s7
  $region1: #{tpu_custom_call.1} parent=0
    #allocation2 [shape = 'u8[1024]{0}', space=vmem, size = 0x400, scoped, tag = 'output window, operand 0, single buffered']
    #allocation3 [shape = 's32[1]{0}', space=sflag, size = 0x4, scoped, tag = 'scoped memory for tpu_custom_call.1']
    %11 = vsyncpa [#allocation3], 0
    // Predicated region
    $region2: #{tpu_custom_call.1} parent=1 // pred_check
      _
    $region3: #{tpu_custom_call.1} parent=1 // pred_check_branch
      %13 = sbr.rel (0) target = $region5
    $region4: #{tpu_custom_call.1} parent=1 // pred_region
      _
    $region5: #{tpu_custom_call.1} parent=1 // pred_fallthru
      _
    // Predicated region
    $region6: #{tpu_custom_call.1} parent=1 // pred_check
      _
    $region7: #{tpu_custom_call.1} parent=1 // pred_check_branch
      %15 = sbr.rel (0) target = $region9
    $region8: #{tpu_custom_call.1} parent=1 // pred_region
      _
    $region9: #{tpu_custom_call.1} parent=1 // pred_fallthru
      _
    // Predicated region
    $region10: #{tpu_custom_call.1} parent=1 // pred_check
      _
    $region11: #{tpu_custom_call.1} parent=1 // pred_check_branch
      %17 = sbr.rel (0) target = $region13
    $region12: #{tpu_custom_call.1} parent=1 // pred_region
      _
    $region13: #{tpu_custom_call.1} parent=1 // pred_fallthru
      _
    // Predicated region
    $region14: #{tpu_custom_call.1} parent=1 // pred_check
      _
    $region15: #{tpu_custom_call.1} parent=1 // pred_check_branch
      %19 = sbr.rel (0) target = $region17
    $region16: #{tpu_custom_call.1} parent=1 // pred_region
      _
    $region17: #{tpu_custom_call.1} parent=1 // pred_fallthru
      _
    // Predicated region
    $region18: #{tpu_custom_call.1} parent=1 // pred_check
      _
    $region19: #{tpu_custom_call.1} parent=1 // pred_check_branch
      %21 = sbr.rel (0) target = $region21
    $region20: #{tpu_custom_call.1} parent=1 // pred_region
      _
    $region21: #{tpu_custom_call.1} parent=1 // pred_fallthru
      _
    // Predicated region
    $region22: #{tpu_custom_call.1} parent=1 // pred_check
      _
    $region23: #{tpu_custom_call.1} parent=1 // pred_check_branch
      %23 = sbr.rel (0) target = $region25
    $region24: #{tpu_custom_call.1} parent=1 // pred_region
      _
    $region25: #{tpu_custom_call.1} parent=1 // pred_fallthru
      _
    %v25 = vld [vmem:[%s0] sm:$0x3]
    %v26 = vld [vmem:[%s1] sm:$0xf]
    %v27 = vld [vmem:[%s1 + $0x4] sm:$0xf]
    %v28 = vld [vmem:[%s1 + $0x8] sm:$0xf]
    %v29 = vld [vmem:[%s1 + $0xc] sm:$0xf]
    %v30 = vld [vmem:[%s1 + $0x10] sm:$0xf]
    %v31 = vld [vmem:[%s1 + $0x14] sm:$0xf]
    %v32 = vld [vmem:[%s1 + $0x18] sm:$0xf]
    %v33 = vld [vmem:[%s1 + $0x1c] sm:$0xf]
    %v34 = vld [vmem:[%s1 + $0x20] sm:$0xf]
    %v35 = vld [vmem:[%s1 + $0x24] sm:$0xf]
    %v36 = vld [vmem:[%s1 + $0x28] sm:$0xf]
    %v37 = vld [vmem:[%s1 + $0x2c] sm:$0xf]
    %v38 = vld [vmem:[%s1 + $0x30] sm:$0xf]
    %v39 = vld [vmem:[%s1 + $0x34] sm:$0xf]
    %v40 = vld [vmem:[%s1 + $0x38] sm:$0xf]
    %v41 = vld [vmem:[%s1 + $0x3c] sm:$0xf]
    %v42 = vld [vmem:[%s1 + $0x40] sm:$0xf]
    %v43 = vld [vmem:[%s1 + $0x44] sm:$0xf]
    %v44 = vld [vmem:[%s1 + $0x48] sm:$0xf]
    %v45 = vld [vmem:[%s1 + $0x4c] sm:$0xf]
    %v46 = vld [vmem:[%s1 + $0x50] sm:$0xf]
    %v47 = vld [vmem:[%s1 + $0x54] sm:$0xf]
    %v48 = vld [vmem:[%s1 + $0x58] sm:$0xf]
    %v49 = vld [vmem:[%s1 + $0x5c] sm:$0xf]
    %v50 = vld [vmem:[%s1 + $0x60] sm:$0xf]
    %v51 = vld [vmem:[%s1 + $0x64] sm:$0xf]
    %v52 = vld [vmem:[%s1 + $0x68] sm:$0xf]
    %v53 = vld [vmem:[%s1 + $0x6c] sm:$0xf]
    %v54 = vld [vmem:[%s1 + $0x70] sm:$0xf]
    %v55 = vld [vmem:[%s1 + $0x74] sm:$0xf]
    %v56 = vld [vmem:[%s1 + $0x78] sm:$0xf]
    %v57 = vld [vmem:[%s1 + $0x7c] sm:$0xf]
    %v58 = vld [vmem:[%s4] sm:$0x1]
    %v59 = vlaneseq
    %v60 = vshrl.u32 %v59, 7
    %v61 = vsub.s32 0, %v60
    %v62 = vrot.slane %v58, %v61
    %v65 = vunpack.c.l.s4 1966171168
    %v66 = vunpack.c.0.s8 %v65
    %v67 = vlaneseq
    %v68 = vshrl.u32 %v67, 7
    %v69 = vsub.s32 %v66, %v68
    %v70 = vrot.slane %v25, %v69
    %v71 = vcombine.high %v70, %v70
    %v73 = vunpack.c.l.s4 1966171168
    %v74 = vunpack.c.0.s8 %v73
    %v75 = vlaneseq
    %v76 = vshrl.u32 %v75, 7
    %v77 = vsub.s32 %v74, %v76
    %v78 = vrot.slane %v70, %v77
    %v80 = vunpack.c.l.s4 1966171168
    %v81 = vunpack.c.0.s8 %v80
    %v82 = vlaneseq
    %v83 = vshrl.u32 %v82, 7
    %v84 = vsub.s32 %v81, %v83
    %v85 = vrot.slane %v71, %v84
    %v120 = vunpack.c.l.b16 %v26
    %v121 = vunpack.c.l.b16 %v27
    %v122 = vunpack.c.l.b16 %v28
    %v123 = vunpack.c.l.b16 %v29
    %v124 = vunpack.c.l.b16 %v30
    %v125 = vunpack.c.l.b16 %v31
    %v126 = vunpack.c.l.b16 %v32
    %v127 = vunpack.c.l.b16 %v33
    %v128 = vunpack.c.l.b16 %v34
    %v129 = vunpack.c.l.b16 %v35
    %v130 = vunpack.c.l.b16 %v36
    %v131 = vunpack.c.l.b16 %v37
    %v132 = vunpack.c.l.b16 %v38
    %v133 = vunpack.c.l.b16 %v39
    %v134 = vunpack.c.l.b16 %v40
    %v135 = vunpack.c.l.b16 %v41
    %v136 = vunpack.c.l.b16 %v42
    %v137 = vunpack.c.l.b16 %v43
    %v138 = vunpack.c.l.b16 %v44
    %v139 = vunpack.c.l.b16 %v45
    %v140 = vunpack.c.l.b16 %v46
    %v141 = vunpack.c.l.b16 %v47
    %v142 = vunpack.c.l.b16 %v48
    %v143 = vunpack.c.l.b16 %v49
    %v144 = vunpack.c.l.b16 %v50
    %v145 = vunpack.c.l.b16 %v51
    %v146 = vunpack.c.l.b16 %v52
    %v147 = vunpack.c.l.b16 %v53
    %v148 = vunpack.c.l.b16 %v54
    %v149 = vunpack.c.l.b16 %v55
    %v150 = vunpack.c.l.b16 %v56
    %v151 = vunpack.c.l.b16 %v57
    %v152 = vpack.c.b16 %v121, %v120
    %v153 = vpack.c.b16 %v123, %v122
    %v154 = vpack.c.b16 %v125, %v124
    %v155 = vpack.c.b16 %v127, %v126
    %v156 = vpack.c.b16 %v129, %v128
    %v157 = vpack.c.b16 %v131, %v130
    %v158 = vpack.c.b16 %v133, %v132
    %v159 = vpack.c.b16 %v135, %v134
    %v160 = vpack.c.b16 %v137, %v136
    %v161 = vpack.c.b16 %v139, %v138
    %v162 = vpack.c.b16 %v141, %v140
    %v163 = vpack.c.b16 %v143, %v142
    %v164 = vpack.c.b16 %v145, %v144
    %v165 = vpack.c.b16 %v147, %v146
    %v166 = vpack.c.b16 %v149, %v148
    %v167 = vpack.c.b16 %v151, %v150
    %184 = vmatprep.subr.bf16.mxu0 0
    %185 = vmatpush1.bf16.msra.mxu0 %v159
    %186 = vmatprep.subr.bf16.mxu0 0
    %187 = vmatpush1.bf16.msra.mxu0 %v158
    %188 = vmatprep.subr.bf16.mxu0 0
    %189 = vmatpush1.bf16.msra.mxu0 %v157
    %190 = vmatprep.subr.bf16.mxu0 0
    %191 = vmatpush1.bf16.msra.mxu0 %v156
    %192 = vmatprep.subr.bf16.mxu0 0
    %193 = vmatpush1.bf16.msra.mxu0 %v155
    %194 = vmatprep.subr.bf16.mxu0 0
    %195 = vmatpush1.bf16.msra.mxu0 %v154
    %196 = vmatprep.subr.bf16.mxu0 0
    %197 = vmatpush1.bf16.msra.mxu0 %v153
    %198 = vmatprep.subr.bf16.mxu0 0
    %199 = vmatpush1.bf16.msra.mxu0 %v152
    %200 = vmatprep.subr.bf16.mxu0 0
    %201 = vmatpush2.bf16.msra.mxu0 %v167
    %202 = vmatprep.subr.bf16.mxu0 0
    %203 = vmatpush2.bf16.msra.mxu0 %v166
    %204 = vmatprep.subr.bf16.mxu0 0
    %205 = vmatpush2.bf16.msra.mxu0 %v165
    %206 = vmatprep.subr.bf16.mxu0 0
    %207 = vmatpush2.bf16.msra.mxu0 %v164
    %208 = vmatprep.subr.bf16.mxu0 0
    %209 = vmatpush2.bf16.msra.mxu0 %v163
    %210 = vmatprep.subr.bf16.mxu0 0
    %211 = vmatpush2.bf16.msra.mxu0 %v162
    %212 = vmatprep.subr.bf16.mxu0 0
    %213 = vmatpush2.bf16.msra.mxu0 %v161
    %214 = vmatprep.subr.bf16.mxu0 0
    %215 = vmatpush2.bf16.msra.mxu0 %v160
    %216 = vmatprep.mubr.bf16.mxu0 %v85
    %217 = vmatmul.mubr.bf16.gmra.mxu0 %v78
    %v218 = vpop.f32.mrf.mxu0
    %v219 = vadd.f32 %v62, %v218
    %v220 = vpop.f32.mrf.mxu0
    %v221 = vpop.f32.mrf.mxu0
    %v222 = vpop.f32.mrf.mxu0
    %223 = vdwg.mxu0
    %vm224 = vcmp.ge.f32.partialorder %v219, 0.0
    %v225 = vmul.f32 %v219, 0.01
    %v226 = vsel %vm224, %v219, %v225
    %v227 = vpack.c.bf16 %v226, %v226
    %v228 = vld [vmem:[%s2] sm:$0xf]
    %v229 = vld [vmem:[%s2 + $0x4] sm:$0xf]
    %v230 = vld [vmem:[%s2 + $0x8] sm:$0xf]
    %v231 = vld [vmem:[%s2 + $0xc] sm:$0xf]
    %v232 = vld [vmem:[%s4 + $0x1] sm:$0x1]
    %v233 = vlaneseq
    %v234 = vshrl.u32 %v233, 7
    %v235 = vsub.s32 0, %v234
    %v236 = vrot.slane %v232, %v235
    %v241 = vunpack.c.l.b16 %v228
    %v242 = vunpack.c.l.b16 %v229
    %v243 = vunpack.c.l.b16 %v230
    %v244 = vunpack.c.l.b16 %v231
    %v245 = vpack.c.b16 %v242, %v241
    %v246 = vpack.c.b16 %v244, %v243
    %vm249 = vcmask 261120
    %v251 = vsel %vm249, %v227, 0
    %253 = vmatprep.subr.bf16.mxu0 0
    %254 = vmatpush1.bf16.msra.mxu0 0
    %255 = vmatprep.subr.bf16.mxu0 0
    %256 = vmatpush1.bf16.msra.mxu0 0
    %257 = vmatprep.subr.bf16.mxu0 0
    %258 = vmatpush1.bf16.msra.mxu0 0
    %259 = vmatprep.subr.bf16.mxu0 0
    %260 = vmatpush1.bf16.msra.mxu0 0
    %261 = vmatprep.subr.bf16.mxu0 0
    %262 = vmatpush1.bf16.msra.mxu0 0
    %263 = vmatprep.subr.bf16.mxu0 0
    %264 = vmatpush1.bf16.msra.mxu0 0
    %265 = vmatprep.subr.bf16.mxu0 0
    %266 = vmatpush1.bf16.msra.mxu0 %v246
    %267 = vmatprep.subr.bf16.mxu0 0
    %268 = vmatpush1.bf16.msra.mxu0 %v245
    %269 = vmatprep.subr.bf16.mxu0 0
    %270 = vmatpush2.bf16.msra.mxu0 0
    %271 = vmatprep.subr.bf16.mxu0 0
    %272 = vmatpush2.bf16.msra.mxu0 0
    %273 = vmatprep.subr.bf16.mxu0 0
    %274 = vmatpush2.bf16.msra.mxu0 0
    %275 = vmatprep.subr.bf16.mxu0 0
    %276 = vmatpush2.bf16.msra.mxu0 0
    %277 = vmatprep.subr.bf16.mxu0 0
    %278 = vmatpush2.bf16.msra.mxu0 0
    %279 = vmatprep.subr.bf16.mxu0 0
    %280 = vmatpush2.bf16.msra.mxu0 0
    %281 = vmatprep.subr.bf16.mxu0 0
    %282 = vmatpush2.bf16.msra.mxu0 0
    %283 = vmatprep.subr.bf16.mxu0 0
    %284 = vmatpush2.bf16.msra.mxu0 0
    %285 = vmatprep.mubr.bf16.mxu0 0
    %286 = vmatmul.mubr.bf16.gmra.mxu0 %v251
    %v287 = vpop.f32.mrf.mxu0
    %v288 = vadd.f32 %v236, %v287
    %v289 = vpop.f32.mrf.mxu0
    %v290 = vpop.f32.mrf.mxu0
    %v291 = vpop.f32.mrf.mxu0
    %292 = vdwg.mxu0
    %vm293 = vcmp.ge.f32.partialorder %v288, 0.0
    %v294 = vmul.f32 %v288, 0.01
    %v295 = vsel %vm293, %v288, %v294
    %v296 = vpack.c.bf16 %v295, %v295
    %v297 = vld [vmem:[%s3] sm:$0xf]
    %v298 = vld [vmem:[%s3 + $0x4] sm:$0xf]
    %v299 = vld [vmem:[%s3 + $0x8] sm:$0xf]
    %v300 = vld [vmem:[%s3 + $0xc] sm:$0xf]
    %v301 = vld [vmem:[%s5] sm:$0x1]
    %v303 = vlaneseq
    %v304 = vshrl.u32 %v303, 7
    %v305 = vsub.s32 0, %v304
    %v306 = vrot.slane %v301, %v305
    %v312 = vunpack.c.l.b16 %v297
    %v313 = vunpack.c.l.b16 %v298
    %v314 = vunpack.c.l.b16 %v299
    %v315 = vunpack.c.l.b16 %v300
    %v316 = vpack.c.b16 %v313, %v312
    %v317 = vpack.c.b16 %v315, %v314
    %v321 = vsel %vm249, %v296, 0
    %323 = vmatprep.subr.bf16.mxu0 0
    %324 = vmatpush1.bf16.msra.mxu0 0
    %325 = vmatprep.subr.bf16.mxu0 0
    %326 = vmatpush1.bf16.msra.mxu0 0
    %327 = vmatprep.subr.bf16.mxu0 0
    %328 = vmatpush1.bf16.msra.mxu0 0
    %329 = vmatprep.subr.bf16.mxu0 0
    %330 = vmatpush1.bf16.msra.mxu0 0
    %331 = vmatprep.subr.bf16.mxu0 0
    %332 = vmatpush1.bf16.msra.mxu0 0
    %333 = vmatprep.subr.bf16.mxu0 0
    %334 = vmatpush1.bf16.msra.mxu0 0
    %335 = vmatprep.subr.bf16.mxu0 0
    %336 = vmatpush1.bf16.msra.mxu0 %v317
    %337 = vmatprep.subr.bf16.mxu0 0
    %338 = vmatpush1.bf16.msra.mxu0 %v316
    %339 = vmatprep.subr.bf16.mxu0 0
    %340 = vmatpush2.bf16.msra.mxu0 0
    %341 = vmatprep.subr.bf16.mxu0 0
    %342 = vmatpush2.bf16.msra.mxu0 0
    %343 = vmatprep.subr.bf16.mxu0 0
    %344 = vmatpush2.bf16.msra.mxu0 0
    %345 = vmatprep.subr.bf16.mxu0 0
    %346 = vmatpush2.bf16.msra.mxu0 0
    %347 = vmatprep.subr.bf16.mxu0 0
    %348 = vmatpush2.bf16.msra.mxu0 0
    %349 = vmatprep.subr.bf16.mxu0 0
    %350 = vmatpush2.bf16.msra.mxu0 0
    %351 = vmatprep.subr.bf16.mxu0 0
    %352 = vmatpush2.bf16.msra.mxu0 0
    %353 = vmatprep.subr.bf16.mxu0 0
    %354 = vmatpush2.bf16.msra.mxu0 0
    %355 = vmatprep.mubr.bf16.mxu0 0
    %356 = vmatmul.mubr.bf16.gmra.mxu0 %v321
    %v357 = vpop.f32.mrf.mxu0
    %v358 = vadd.f32 %v306, %v357
    %v359 = vpop.f32.mrf.mxu0
    %v360 = vpop.f32.mrf.mxu0
    %v361 = vpop.f32.mrf.mxu0
    %362 = vdwg.mxu0
    %vm363 = vcmask 517120
    %364 = vst.msk [vmem:[#allocation2] sm:$0x3] %vm363, %v358
    // Predicated region
    $region26: #{tpu_custom_call.1} parent=1 // pred_check
      _
    $region27: #{tpu_custom_call.1} parent=1 // pred_check_branch
      %366 = sbr.rel (0) target = $region29
    $region28: #{tpu_custom_call.1} parent=1 // pred_region
      %s368 = ssub.s32 32, 32
      %369 = vsyncadd [#allocation3], %s368
      %s371 = sshll.u32 [#allocation2], 4
      %s372 = int_to_ptr.vmem [resolvable:$true] %s371
      %374 = dma.vmem_to_hbm [thread:$0]  %s372, 32, %s6, [#allocation3]
    $region29: #{tpu_custom_call.1} parent=1 // pred_fallthru
      _
    // Predicated region
    $region30: #{tpu_custom_call.1} parent=1 // pred_check
      _
    $region31: #{tpu_custom_call.1} parent=1 // pred_check_branch
      %376 = sbr.rel (0) target = $region33
    $region32: #{tpu_custom_call.1} parent=1 // pred_region
      %377 = dma.done [#allocation3], 32
    $region33: #{tpu_custom_call.1} parent=1 // pred_fallthru
      _
    %378 = vsyncpa [#allocation3], 1

</llo_original>
